<compile_context>
chip_gen: v7x
topology: tpu7x:2x2x1
jax: 0.10.0
libtpu: 0.0.40
codegen_flags: <defaults>
</compile_context>

<pallas_src>
import functools

import jax
import jax.numpy as jnp
from jax import lax
from jax.experimental import pallas as pl
from jax.experimental.pallas import tpu as pltpu


def _round_up(x, m):
    return ((x + m - 1) // m) * m


def _row_pad(n):
    # Pad the row count so reasonably large tiles divide it evenly.
    if n <= 128:
        return _round_up(n, 8)
    if n <= 4096:
        return _round_up(n, 128)
    return _round_up(n, 512)


def _vmem_budget_and_limit():
    cap = 64 * 1024 * 1024                    # safe default (v7x per-TC VMEM)
    try:
        cap = int(getattr(pltpu.get_tpu_info(), "vmem_capacity_bytes", cap))
    except Exception:
        pass
    cap = max(32 * 1024 * 1024, min(cap, 128 * 1024 * 1024))
    return int(cap * 0.65), int(cap * 0.75)   # (tile-pick budget, scoped limit)


def _pick_tiles(n_pad, c_pad, itemsize, budget_bytes):
    # Keep >= 2 row blocks on the parallel axis (v7x megacore) when possible.
    tm_max = n_pad if n_pad < 16 else n_pad // 2
    tm_cands = [t for t in (512, 256, 128, 64, 32, 16, 8)
                if t <= tm_max and n_pad % t == 0]
    tk_cands = [t for t in (2048, 1024, 512, 256, 128, 64, 32, 16, 8)
                if t <= n_pad and n_pad % t == 0]

    def vmem_bytes(tm, tk):
        return (2 * (tm + tk) * c_pad * itemsize   # double-buffered input blocks
                + 3 * tm * tk * 4                  # sim / exp / select temporaries
                + 4 * tm * 128 * 4)                # (tm,1) scratch + out block (lane pad)

    # Larger tm first (halves the dominant column-operand HBM traffic), then the
    # largest column tile that still fits the budget.
    for tm in tm_cands:
        for tk in tk_cands:
            if vmem_bytes(tm, tk) <= budget_bytes:
                return tm, tk
    # TODO(synk): for c_pad so large that even tiny tiles bust the budget
    # (f32 c_pad >~ 8K on v7x), block the feature dim with a third "arbitrary"
    # grid axis and a (tm, tk) f32 sim accumulator instead of shrinking tiles.
    return 8, 8


def nt_xent_lse_kernel(zr_ref, zc_ref, out_ref, m_sc, l_sc, *,
                       tm, tk, n_valid, n_pad):
    i = pl.program_id(0)               # row-block index    ("parallel")
    j = pl.program_id(1)               # column-block index ("arbitrary", reduction)
    nj = pl.num_programs(1)

    @pl.when(j == 0)
    def _init():
        m_sc[...] = jnp.full_like(m_sc, -jnp.inf)
        l_sc[...] = jnp.zeros_like(l_sc)

    # One MXU matmul per step.  Operands are already normalized, 1/T-scaled
    # (rows only) and optionally bf16 — no per-step VPU/EUP prologue.  Contract
    # last-with-last: no explicit transpose.  f32 accumulation.
    sim = lax.dot_general(zr_ref[...], zc_ref[...],
                          dimension_numbers=(((1,), (1,)), ((), ())),
                          preferred_element_type=jnp.float32)      # (tm, tk)

    def online_update(s):
        m_prev = m_sc[...]
        m_new = jnp.maximum(m_prev, jnp.max(s, axis=-1, keepdims=True))
        l_sc[...] = (jnp.exp(m_prev - m_new) * l_sc[...]
                     + jnp.sum(jnp.exp(s - m_new), axis=-1, keepdims=True))
        m_sc[...] = m_new

    # Masks are only needed when this tile touches the diagonal (row/column
    # block overlap) or, if rows were padded, contains columns >= n_valid.
    has_pad = n_valid != n_pad                          # trace-time Python bool
    overlaps = (j * tk < (i + 1) * tm) & (i * tm < (j + 1) * tk)
    if has_pad:
        needs_mask = overlaps | ((j + 1) * tk > n_valid)
    else:
        needs_mask = overlaps

    @pl.when(needs_mask)
    def _masked():
        row_ids = i * tm + lax.broadcasted_iota(jnp.int32, (tm, 1), 0)
        col_ids = j * tk + lax.broadcasted_iota(jnp.int32, (1, tk), 1)
        invalid = col_ids == row_ids                    # self-similarity
        if has_pad:
            invalid = invalid | (col_ids >= n_valid)    # padded columns
        online_update(jnp.where(invalid, -jnp.inf, sim))

    @pl.when(jnp.logical_not(needs_mask))
    def _unmasked():
        online_update(sim)

    @pl.when(j == nj - 1)
    def _finalize():
        out_ref[...] = m_sc[...] + jnp.log(l_sc[...])


def nt_xent_loss(z_i, z_j, temperature, use_bf16_matmul=False,
                 tile_m=None, tile_k=None):
    """JAX wrapper.  z_i, z_j: (batch, feature) -> scalar loss."""
    assert z_i.shape == z_j.shape and z_i.ndim == 2
    B, C = z_i.shape
    N = 2 * B

    # ---- O(N*C) prologue in plain JAX (hoisted out of the kernel) ----
    z = jnp.concatenate([z_i.astype(jnp.float32),
                         z_j.astype(jnp.float32)], axis=0)            # (N, C)
    # Row-normalize once.  PyTorch's CosineSimilarity eps:
    # z / max(||z||, 1e-8) == z * rsqrt(max(||z||^2, 1e-16)).
    zh = z * lax.rsqrt(jnp.maximum(jnp.sum(z * z, axis=-1, keepdims=True),
                                   1e-16))
    inv_t = jnp.float32(1.0 / float(temperature))
    # Positive logits in f32: sim[r, (r+B) mod N] is symmetric in the two views.
    pos_half = jnp.sum(zh[:B] * zh[B:], axis=-1) * inv_t              # (B,)
    pos = jnp.concatenate([pos_half, pos_half], axis=0)               # (N,)

    # Pad rows to a tile-friendly multiple (padded rows dropped at the end) and
    # features to a lane-aligned multiple of 128 (zeros leave dots intact).
    n_pad = _row_pad(N)
    c_pad = _round_up(C, 128)
    zh = jnp.pad(zh, ((0, n_pad - N), (0, c_pad - C)))

    zr = zh * inv_t                    # 1/T folded into the row operand only
    zc = zh
    if use_bf16_matmul:                # DMA bf16 blocks; f32 accum / softmax
        zr = zr.astype(jnp.bfloat16)
        zc = zc.astype(jnp.bfloat16)

    budget, vmem_limit = _vmem_budget_and_limit()
    tm, tk = _pick_tiles(n_pad, c_pad, zr.dtype.itemsize, budget)
    if tile_m is not None:
        tm = tile_m
    if tile_k is not None:
        tk = tile_k
    assert n_pad % tm == 0 and n_pad % tk == 0

    kernel = functools.partial(nt_xent_lse_kernel, tm=tm, tk=tk,
                               n_valid=N, n_pad=n_pad)

    per_row_lse = pl.pallas_call(
        kernel,
        out_shape=jax.ShapeDtypeStruct((n_pad, 1), jnp.float32),
        grid_spec=pltpu.PrefetchScalarGridSpec(
            num_scalar_prefetch=0,
            grid=(n_pad // tm, n_pad // tk),
            in_specs=[
                pl.BlockSpec((tm, c_pad), lambda i, j: (i, 0)),   # row block
                pl.BlockSpec((tk, c_pad), lambda i, j: (j, 0)),   # column block
            ],
            out_specs=pl.BlockSpec((tm, 1), lambda i, j: (i, 0)),
            scratch_shapes=[pltpu.VMEM((tm, 1), jnp.float32),     # running max
                            pltpu.VMEM((tm, 1), jnp.float32)],    # running sum
        ),
        compiler_params=pltpu.CompilerParams(
            dimension_semantics=("parallel", "arbitrary"),
            vmem_limit_bytes=vmem_limit),
    )(zr, zc)

    # Tiny final reduction in plain JAX (drop padded rows, subtract positives).
    lse = per_row_lse[:N, 0]
    return jnp.sum(lse - pos) / N


def nt_xent_ref(z_i, z_j, temperature):
    """Pure-JAX reference mirroring the PyTorch module."""
    B = z_i.shape[0]
    N = 2 * B
    z = jnp.concatenate([z_i, z_j], axis=0).astype(jnp.float32)
    norms = jnp.maximum(jnp.sqrt(jnp.sum(z * z, axis=-1, keepdims=True)), 1e-8)
    zh = z / norms
    sim = (zh @ zh.T) / temperature
    idx = jnp.arange(N)
    pos_col = jnp.where(idx < B, idx + B, idx - B)
    pos = sim[idx, pos_col]                                       # (N,)
    sim_nd = jnp.where(jnp.eye(N, dtype=bool), -jnp.inf, sim)
    lse = jax.scipy.special.logsumexp(sim_nd, axis=-1)            # (N,)
    return jnp.sum(lse - pos) / N


if __name__ == "__main__":
    temperature = 0.5
    key = jax.random.PRNGKey(0)
    k1, k2, k3, k4, k5, k6 = jax.random.split(key, 6)

    # Case 1: batch=4, features=32 (C padded to 128, single tile).
    z_i = jax.random.normal(k1, (4, 32), dtype=jnp.float32)
    z_j = jax.random.normal(k2, (4, 32), dtype=jnp.float32)
    loss = jax.block_until_ready(nt_xent_loss(z_i, z_j, temperature))
    ref = nt_xent_ref(z_i, z_j, temperature)
    assert jnp.allclose(loss, ref, rtol=1e-5, atol=1e-5), (loss, ref)

    # bf16 MXU path (blocks DMA'd as bf16, f32 accumulation / softmax, f32
    # positive logit) — looser tolerance from bf16-rounded similarities.
    loss_bf16 = jax.block_until_ready(
        nt_xent_loss(z_i, z_j, temperature, use_bf16_matmul=True))
    assert jnp.allclose(loss_bf16, ref, rtol=3e-2, atol=3e-2), (loss_bf16, ref)

    # Case 2: batch=6, features=48 (row padding N=12 -> 16, two row blocks).
    z_i2 = jax.random.normal(k3, (6, 48), dtype=jnp.float32)
    z_j2 = jax.random.normal(k4, (6, 48), dtype=jnp.float32)
    loss2 = jax.block_until_ready(nt_xent_loss(z_i2, z_j2, temperature))
    ref2 = nt_xent_ref(z_i2, z_j2, temperature)
    assert jnp.allclose(loss2, ref2, rtol=1e-5, atol=1e-5), (loss2, ref2)

    # Case 3: batch=13, features=40 with forced 8x8 tiles (N=26 -> n_pad=32):
    # exercises maskless tiles, diagonal-overlap tiles and the padded-column
    # tile inside one grid.
    z_i3 = jax.random.normal(k5, (13, 40), dtype=jnp.float32)
    z_j3 = jax.random.normal(k6, (13, 40), dtype=jnp.float32)
    loss3 = jax.block_until_ready(
        nt_xent_loss(z_i3, z_j3, temperature, tile_m=8, tile_k=8))
    ref3 = nt_xent_ref(z_i3, z_j3, temperature)
    assert jnp.allclose(loss3, ref3, rtol=1e-5, atol=1e-5), (loss3, ref3)

    print("KERNEL_OK")
</pallas_src>

<mosaic_0001>
module attributes {stable_mosaic.version = 11 : i64} {
  func.func @nt_xent_lse_kernel(%arg0: i32, %arg1: i32, %arg2: memref<8x128xf32, #tpu.memory_space<vmem>>, %arg3: memref<8x128xf32, #tpu.memory_space<vmem>>, %arg4: memref<8x1xf32, #tpu.memory_space<vmem>>, %arg5: memref<8x1xf32, #tpu.memory_space<vmem>>, %arg6: memref<8x1xf32, #tpu.memory_space<vmem>>) attributes {dimension_semantics = [#tpu.dimension_semantics<parallel>, #tpu.dimension_semantics<arbitrary>], iteration_bounds = array<i64: 1, 1>, scalar_prefetch = 0 : i64, scratch_operands = 2 : i64, tpu.core_type = #tpu.core_type<tc>, window_params = [{transform_indices = @transform_0, window_bounds = array<i64: 8, 128>}, {transform_indices = @transform_1, window_bounds = array<i64: 8, 128>}, {transform_indices = @transform_2, window_bounds = array<i64: 8, 1>}]} {
    %c0_i32 = arith.constant 0 : i32
    %0 = arith.cmpi eq, %arg1, %c0_i32 : i32
    %1 = arith.extui %0 : i1 to i32
    %c0_i32_0 = arith.constant 0 : i32
    %2 = arith.cmpi ne, %1, %c0_i32_0 : i32
    scf.if %2 {
      %cst_12 = arith.constant 0xFF800000 : f32
      %23 = vector.broadcast %cst_12 : f32 to vector<8x1xf32>
      %c0_13 = arith.constant 0 : index
      %c0_14 = arith.constant 0 : index
      %24 = vector.load %arg5[%c0_13, %c0_14] : memref<8x1xf32, #tpu.memory_space<vmem>>, vector<8x1xf32>
      tpu.vector_store %arg5[%c0_13, %c0_14], %23 {strides = array<i32>} : memref<8x1xf32, #tpu.memory_space<vmem>>, vector<8x1xf32>,
      %cst_15 = arith.constant 0.000000e+00 : f32
      %25 = vector.broadcast %cst_15 : f32 to vector<8x1xf32>
      %c0_16 = arith.constant 0 : index
      %c0_17 = arith.constant 0 : index
      %26 = vector.load %arg6[%c0_16, %c0_17] : memref<8x1xf32, #tpu.memory_space<vmem>>, vector<8x1xf32>
      tpu.vector_store %arg6[%c0_16, %c0_17], %25 {strides = array<i32>} : memref<8x1xf32, #tpu.memory_space<vmem>>, vector<8x1xf32>,
    } else {
    }
    %c0 = arith.constant 0 : index
    %c0_1 = arith.constant 0 : index
    %3 = vector.load %arg2[%c0, %c0_1] : memref<8x128xf32, #tpu.memory_space<vmem>>, vector<8x128xf32>
    %c0_2 = arith.constant 0 : index
    %c0_3 = arith.constant 0 : index
    %4 = vector.load %arg3[%c0_2, %c0_3] : memref<8x128xf32, #tpu.memory_space<vmem>>, vector<8x128xf32>
    %cst = arith.constant dense<0.000000e+00> : vector<8x8xf32>
    %5 = tpu.matmul %3, %4, %cst {dimension_numbers = #tpu.dot_dimension_numbers<[1], [1], [0], [0], [0, 0, 1, 0], [], []>} : vector<8x128xf32>, vector<8x128xf32>, vector<8x8xf32> -> vector<8x8xf32>
    %c8_i32 = arith.constant 8 : i32
    %6 = arith.muli %arg1, %c8_i32 : i32
    %c1_i32 = arith.constant 1 : i32
    %7 = arith.addi %arg0, %c1_i32 : i32
    %c8_i32_4 = arith.constant 8 : i32
    %8 = arith.muli %7, %c8_i32_4 : i32
    %9 = arith.cmpi slt, %6, %8 : i32
    %c8_i32_5 = arith.constant 8 : i32
    %10 = arith.muli %arg0, %c8_i32_5 : i32
    %c1_i32_6 = arith.constant 1 : i32
    %11 = arith.addi %arg1, %c1_i32_6 : i32
    %c8_i32_7 = arith.constant 8 : i32
    %12 = arith.muli %11, %c8_i32_7 : i32
    %13 = arith.cmpi slt, %10, %12 : i32
    %14 = arith.andi %9, %13 : i1
    %15 = arith.extui %14 : i1 to i32
    %c0_i32_8 = arith.constant 0 : i32
    %16 = arith.cmpi ne, %15, %c0_i32_8 : i32
    scf.if %16 {
      %c8_i32_12 = arith.constant 8 : i32
      %23 = arith.muli %arg0, %c8_i32_12 : i32
      %24 = tpu.iota {dimensions = array<i32: 0>} : vector<8x1xi32>
      %25 = vector.broadcast %23 : i32 to vector<8x1xi32>
      %26 = arith.addi %25, %24 : vector<8x1xi32>
      %c8_i32_13 = arith.constant 8 : i32
      %27 = arith.muli %arg1, %c8_i32_13 : i32
      %28 = tpu.iota {dimensions = array<i32: 1>} : vector<1x8xi32>
      %29 = vector.broadcast %27 : i32 to vector<1x8xi32>
      %30 = arith.addi %29, %28 : vector<1x8xi32>
      %31 = vector.broadcast %30 : vector<1x8xi32> to vector<8x8xi32>
      %32 = vector.broadcast %26 : vector<8x1xi32> to vector<8x8xi32>
      %33 = arith.cmpi eq, %31, %32 : vector<8x8xi32>
      %cst_14 = arith.constant 0xFF800000 : f32
      %34 = vector.broadcast %cst_14 : f32 to vector<8x8xf32>
      %35 = arith.select %33, %34, %5 : vector<8x8xi1>, vector<8x8xf32>
      %c0_15 = arith.constant 0 : index
      %c0_16 = arith.constant 0 : index
      %36 = vector.load %arg5[%c0_15, %c0_16] : memref<8x1xf32, #tpu.memory_space<vmem>>, vector<8x1xf32>
      %cst_17 = arith.constant dense<0xFF800000> : vector<8xf32>
      %37 = vector.multi_reduction <maximumf>, %35, %cst_17 [1] : vector<8x8xf32> to vector<8xf32>
      %38 = vector.shape_cast %37 : vector<8xf32> to vector<8x1xf32>
      %39 = arith.maximumf %36, %38 : vector<8x1xf32>
      %40 = arith.subf %36, %39 : vector<8x1xf32>
      %41 = math.exp %40 : vector<8x1xf32>
      %c0_18 = arith.constant 0 : index
      %c0_19 = arith.constant 0 : index
      %42 = vector.load %arg6[%c0_18, %c0_19] : memref<8x1xf32, #tpu.memory_space<vmem>>, vector<8x1xf32>
      %43 = arith.mulf %41, %42 : vector<8x1xf32>
      %44 = vector.broadcast %39 : vector<8x1xf32> to vector<8x8xf32>
      %45 = arith.subf %35, %44 : vector<8x8xf32>
      %46 = math.exp %45 : vector<8x8xf32>
      %cst_20 = arith.constant dense<0.000000e+00> : vector<8xf32>
      %47 = vector.multi_reduction <add>, %46, %cst_20 [1] : vector<8x8xf32> to vector<8xf32>
      %48 = vector.shape_cast %47 : vector<8xf32> to vector<8x1xf32>
      %49 = arith.addf %43, %48 : vector<8x1xf32>
      %c0_21 = arith.constant 0 : index
      %c0_22 = arith.constant 0 : index
      %50 = vector.load %arg6[%c0_21, %c0_22] : memref<8x1xf32, #tpu.memory_space<vmem>>, vector<8x1xf32>
      tpu.vector_store %arg6[%c0_21, %c0_22], %49 {strides = array<i32>} : memref<8x1xf32, #tpu.memory_space<vmem>>, vector<8x1xf32>,
      %c0_23 = arith.constant 0 : index
      %c0_24 = arith.constant 0 : index
      %51 = vector.load %arg5[%c0_23, %c0_24] : memref<8x1xf32, #tpu.memory_space<vmem>>, vector<8x1xf32>
      tpu.vector_store %arg5[%c0_23, %c0_24], %39 {strides = array<i32>} : memref<8x1xf32, #tpu.memory_space<vmem>>, vector<8x1xf32>,
    } else {
    }
    %true = arith.constant true
    %17 = arith.xori %14, %true : i1
    %18 = arith.extui %17 : i1 to i32
    %c0_i32_9 = arith.constant 0 : i32
    %19 = arith.cmpi ne, %18, %c0_i32_9 : i32
    scf.if %19 {
      %c0_12 = arith.constant 0 : index
      %c0_13 = arith.constant 0 : index
      %23 = vector.load %arg5[%c0_12, %c0_13] : memref<8x1xf32, #tpu.memory_space<vmem>>, vector<8x1xf32>
      %cst_14 = arith.constant dense<0xFF800000> : vector<8xf32>
      %24 = vector.multi_reduction <maximumf>, %5, %cst_14 [1] : vector<8x8xf32> to vector<8xf32>
      %25 = vector.shape_cast %24 : vector<8xf32> to vector<8x1xf32>
      %26 = arith.maximumf %23, %25 : vector<8x1xf32>
      %27 = arith.subf %23, %26 : vector<8x1xf32>
      %28 = math.exp %27 : vector<8x1xf32>
      %c0_15 = arith.constant 0 : index
      %c0_16 = arith.constant 0 : index
      %29 = vector.load %arg6[%c0_15, %c0_16] : memref<8x1xf32, #tpu.memory_space<vmem>>, vector<8x1xf32>
      %30 = arith.mulf %28, %29 : vector<8x1xf32>
      %31 = vector.broadcast %26 : vector<8x1xf32> to vector<8x8xf32>
      %32 = arith.subf %5, %31 : vector<8x8xf32>
      %33 = math.exp %32 : vector<8x8xf32>
      %cst_17 = arith.constant dense<0.000000e+00> : vector<8xf32>
      %34 = vector.multi_reduction <add>, %33, %cst_17 [1] : vector<8x8xf32> to vector<8xf32>
      %35 = vector.shape_cast %34 : vector<8xf32> to vector<8x1xf32>
      %36 = arith.addf %30, %35 : vector<8x1xf32>
      %c0_18 = arith.constant 0 : index
      %c0_19 = arith.constant 0 : index
      %37 = vector.load %arg6[%c0_18, %c0_19] : memref<8x1xf32, #tpu.memory_space<vmem>>, vector<8x1xf32>
      tpu.vector_store %arg6[%c0_18, %c0_19], %36 {strides = array<i32>} : memref<8x1xf32, #tpu.memory_space<vmem>>, vector<8x1xf32>,
      %c0_20 = arith.constant 0 : index
      %c0_21 = arith.constant 0 : index
      %38 = vector.load %arg5[%c0_20, %c0_21] : memref<8x1xf32, #tpu.memory_space<vmem>>, vector<8x1xf32>
      tpu.vector_store %arg5[%c0_20, %c0_21], %26 {strides = array<i32>} : memref<8x1xf32, #tpu.memory_space<vmem>>, vector<8x1xf32>,
    } else {
    }
    %c0_i32_10 = arith.constant 0 : i32
    %20 = arith.cmpi eq, %arg1, %c0_i32_10 : i32
    %21 = arith.extui %20 : i1 to i32
    %c0_i32_11 = arith.constant 0 : i32
    %22 = arith.cmpi ne, %21, %c0_i32_11 : i32
    scf.if %22 {
      %c0_12 = arith.constant 0 : index
      %c0_13 = arith.constant 0 : index
      %23 = vector.load %arg5[%c0_12, %c0_13] : memref<8x1xf32, #tpu.memory_space<vmem>>, vector<8x1xf32>
      %c0_14 = arith.constant 0 : index
      %c0_15 = arith.constant 0 : index
      %24 = vector.load %arg6[%c0_14, %c0_15] : memref<8x1xf32, #tpu.memory_space<vmem>>, vector<8x1xf32>
      %25 = math.log %24 : vector<8x1xf32>
      %26 = arith.addf %23, %25 : vector<8x1xf32>
      %c0_16 = arith.constant 0 : index
      %c0_17 = arith.constant 0 : index
      %27 = vector.load %arg4[%c0_16, %c0_17] : memref<8x1xf32, #tpu.memory_space<vmem>>, vector<8x1xf32>
      tpu.vector_store %arg4[%c0_16, %c0_17], %26 {strides = array<i32>} : memref<8x1xf32, #tpu.memory_space<vmem>>, vector<8x1xf32>,
    } else {
    }
    return
  }
  func.func @transform_0(%arg0: i32, %arg1: i32) -> (i32, i32) {
    %c0_i32 = arith.constant 0 : i32
    %c0_i32_0 = arith.constant 0 : i32
    return %arg0, %c0_i32 : i32, i32
  }
  func.func @transform_1(%arg0: i32, %arg1: i32) -> (i32, i32) {
    %c0_i32 = arith.constant 0 : i32
    %c0_i32_0 = arith.constant 0 : i32
    return %arg1, %c0_i32 : i32, i32
  }
  func.func @transform_2(%arg0: i32, %arg1: i32) -> (i32, i32) {
    %c0_i32 = arith.constant 0 : i32
    %c0_i32_0 = arith.constant 0 : i32
    return %arg0, %c0_i32 : i32, i32
  }
}

</mosaic_0001>

<llo_original>
// kernel: tpu_custom_call.1
$region0: #{tpu_custom_call.1}
  #allocation0 [shape = 'u32[]', space=smem, size = 0x4, offset = 0x4, fixed_abs, tag = 'smem constant byte address 0x4 - core index']
  #allocation1 [shape = 'u32[144,128]{1,0:T(1,128)}', space=vmem, size = 0x12000, scoped, tag = 'internal scratch']
  #allocation2 [shape = 'f32[8,1]{1,0:T(8,128)}', space=vmem, size = 0x1000, scoped, tag = 'scratch operand']
  #allocation3 [shape = 'f32[8,1]{1,0:T(8,128)}', space=vmem, size = 0x1000, scoped, tag = 'scratch operand']
  %s0 = inlined_call_operand.hbm [shape: f32[8,128], index: 0, kind: input, shape index: {}]
  %s1 = inlined_call_operand.hbm [shape: f32[8,128], index: 1, kind: input, shape index: {}]
  %s2 = inlined_call_operand.vmem [shape: f32[8,1], index: 2, kind: output, shape index: {}]
  %s3 = sld [smem:[#allocation0]]
  $region42: #{tpu_custom_call.1} parent=0
    _
  %s5 = ssub.s32 1, %s3
  %s6 = scalar_select 0, %s5, %s3
  $region1: #{tpu_custom_call.1} parent=0
    #allocation4 [shape = 'u8[4096]{0}', space=vmem, size = 0x1000, scoped, tag = 'input window, operand 0, single buffered']
    #allocation5 [shape = 's32[1]{0}', space=sflag, size = 0x4, scoped, tag = 'scoped memory for tpu_custom_call.1']
    #allocation6 [shape = 'u8[4096]{0}', space=vmem, size = 0x1000, scoped, tag = 'input window, operand 1, single buffered']
    #allocation7 [shape = 's32[1]{0}', space=sflag, size = 0x4, scoped, tag = 'scoped memory for tpu_custom_call.1']
    %7 = vsyncpa [#allocation5], 0
    %8 = vsyncpa [#allocation7], 0
    // Predicated region
    $region2: #{tpu_custom_call.1} parent=1 // pred_check
      _
    $region3: #{tpu_custom_call.1} parent=1 // pred_check_branch
      %10 = sbr.rel (0) target = $region5
    $region4: #{tpu_custom_call.1} parent=1 // pred_region
      %s12 = ssub.s32 128, 128
      %13 = vsyncadd [#allocation5], %s12
      %s15 = sshll.u32 [#allocation4], 4
      %s16 = int_to_ptr.vmem [resolvable:$true] %s15
      %18 = dma.hbm_to_vmem [thread:$0]  %s0, 128, %s16, [#allocation5]
    $region5: #{tpu_custom_call.1} parent=1 // pred_fallthru
      _
    // Predicated region
    $region6: #{tpu_custom_call.1} parent=1 // pred_check
      _
    $region7: #{tpu_custom_call.1} parent=1 // pred_check_branch
      %20 = sbr.rel (0) target = $region9
    $region8: #{tpu_custom_call.1} parent=1 // pred_region
      %s22 = ssub.s32 128, 128
      %23 = vsyncadd [#allocation7], %s22
      %s25 = sshll.u32 [#allocation6], 4
      %s26 = int_to_ptr.vmem [resolvable:$true] %s25
      %28 = dma.hbm_to_vmem [thread:$0]  %s1, 128, %s26, [#allocation7]
    $region9: #{tpu_custom_call.1} parent=1 // pred_fallthru
      _
    // Predicated region
    $region10: #{tpu_custom_call.1} parent=1 // pred_check
      _
    $region11: #{tpu_custom_call.1} parent=1 // pred_check_branch
      %30 = sbr.rel (0) target = $region13
    $region12: #{tpu_custom_call.1} parent=1 // pred_region
      %31 = dma.done [#allocation5], 128
    $region13: #{tpu_custom_call.1} parent=1 // pred_fallthru
      _
    // Predicated region
    $region14: #{tpu_custom_call.1} parent=1 // pred_check
      _
    $region15: #{tpu_custom_call.1} parent=1 // pred_check_branch
      %33 = sbr.rel (0) target = $region17
    $region16: #{tpu_custom_call.1} parent=1 // pred_region
      %34 = dma.done [#allocation7], 128
    $region17: #{tpu_custom_call.1} parent=1 // pred_fallthru
      _
    %p35 = scmp.eq.s32.totalorder 0, 0
    // Predicated region
    $region18: #{tpu_custom_call.1} parent=1 // pred_check
      %p36 = pneg %p35
    $region19: #{tpu_custom_call.1} parent=1 // pred_check_branch
      %38 = sbr.rel (%p36) target = $region21
    $region20: #{tpu_custom_call.1} parent=1 // pred_region
      %vm39 = vcmask 7168
      %40 = vst.msk [vmem:[#allocation2] sm:$0xff] %vm39, -inf
      %41 = vst.msk [vmem:[#allocation3] sm:$0xff] %vm39, 0.0
    $region21: #{tpu_custom_call.1} parent=1 // pred_fallthru
      _
    %v42 = vld [vmem:[#allocation4] sm:$0xff]
    %v43 = vld [vmem:[#allocation6] sm:$0xff]
    %44 = vmatprep.subr.mxu0 0.0
    %45 = vmatpush1.xpose.msra.mxu0 %v43
    %46 = vmatprep.subr.mxu0 0.0
    %47 = vmatpush1.xpose.msra.mxu0 0.0
    %48 = vmatprep.subr.mxu0 0.0
    %49 = vmatpush1.xpose.msra.mxu0 0.0
    %50 = vmatprep.subr.mxu0 0.0
    %51 = vmatpush1.xpose.msra.mxu0 0.0
    %52 = vmatprep.subr.mxu0 0.0
    %53 = vmatpush1.xpose.msra.mxu0 0.0
    %54 = vmatprep.subr.mxu0 0.0
    %55 = vmatpush1.xpose.msra.mxu0 0.0
    %56 = vmatprep.subr.mxu0 0.0
    %57 = vmatpush1.xpose.msra.mxu0 0.0
    %58 = vmatprep.subr.mxu0 0.0
    %59 = vmatpush1.xpose.msra.mxu0 0.0
    %60 = vmatprep.subr.mxu0 0.0
    %61 = vmatpush1.xpose.msra.mxu0 0.0
    %62 = vmatprep.subr.mxu0 0.0
    %63 = vmatpush1.xpose.msra.mxu0 0.0
    %64 = vmatprep.subr.mxu0 0.0
    %65 = vmatpush1.xpose.msra.mxu0 0.0
    %66 = vmatprep.subr.mxu0 0.0
    %67 = vmatpush1.xpose.msra.mxu0 0.0
    %68 = vmatprep.subr.mxu0 0.0
    %69 = vmatpush1.xpose.msra.mxu0 0.0
    %70 = vmatprep.subr.mxu0 0.0
    %71 = vmatpush1.xpose.msra.mxu0 0.0
    %72 = vmatprep.subr.mxu0 0.0
    %73 = vmatpush1.xpose.msra.mxu0 0.0
    %74 = vmatprep.subr.mxu0 0.0
    %75 = vmatpush1.xpose.msra.mxu0 0.0
    %76 = vmatprep.subr.mxu0 0.0
    %77 = vmatpush1.xpose.msra.mxu0 0.0
    %78 = vmatprep.subr.mxu0 0.0
    %79 = vmatpush1.xpose.msra.mxu0 0.0
    %80 = vmatprep.subr.mxu0 0.0
    %81 = vmatpush1.xpose.msra.mxu0 0.0
    %82 = vmatprep.subr.mxu0 0.0
    %83 = vmatpush1.xpose.msra.mxu0 0.0
    %84 = vmatprep.subr.mxu0 0.0
    %85 = vmatpush1.xpose.msra.mxu0 0.0
    %86 = vmatprep.subr.mxu0 0.0
    %87 = vmatpush1.xpose.msra.mxu0 0.0
    %88 = vmatprep.subr.mxu0 0.0
    %89 = vmatpush1.xpose.msra.mxu0 0.0
    %90 = vmatprep.subr.mxu0 0.0
    %91 = vmatpush1.xpose.msra.mxu0 0.0
    %92 = vmatprep.subr.mxu0 0.0
    %93 = vmatpush1.xpose.msra.mxu0 0.0
    %94 = vmatprep.subr.mxu0 0.0
    %95 = vmatpush1.xpose.msra.mxu0 0.0
    %96 = vmatprep.subr.mxu0 0.0
    %97 = vmatpush1.xpose.msra.mxu0 0.0
    %98 = vmatprep.subr.mxu0 0.0
    %99 = vmatpush1.xpose.msra.mxu0 0.0
    %100 = vmatprep.subr.mxu0 0.0
    %101 = vmatpush1.xpose.msra.mxu0 0.0
    %102 = vmatprep.subr.mxu0 0.0
    %103 = vmatpush1.xpose.msra.mxu0 0.0
    %104 = vmatprep.subr.mxu0 0.0
    %105 = vmatpush1.xpose.msra.mxu0 0.0
    %106 = vmatprep.subr.mxu0 0.0
    %107 = vmatpush1.xpose.msra.mxu0 0.0
    %108 = vmatprep.mubr.f32.mxu0 0.0
    %109 = vmatmul.mubr.f32.gmra.mrb[0].mxu0 %v42
    %v110 = vpop.f32.mrb[0].mxu0
    %v111 = vadd.f32 0.0, %v110
    %v112 = vpop.f32.mrb[0].mxu0
    %113 = vdwg.mxu0
    %s114 = smul.u32 0, 8
    %s115 = sadd.s32 0, 1
    %s116 = smul.u32 %s115, 8
    %p117 = scmp.lt.s32.totalorder %s114, %s116
    %s118 = smul.u32 0, 8
    %s119 = sadd.s32 0, 1
    %s120 = smul.u32 %s119, 8
    %p121 = scmp.lt.s32.totalorder %s118, %s120
    %p122 = pnand %p117, %p121
    %p123 = pneg %p122
    // Predicated region
    $region22: #{tpu_custom_call.1} parent=1 // pred_check
      _
    $region23: #{tpu_custom_call.1} parent=1 // pred_check_branch
      %125 = sbr.rel (%p122) target = $region25
    $region24: #{tpu_custom_call.1} parent=1 // pred_region
      %v126 = vlaneseq
      %v127 = vshrl.u32 %v126, 7
      %v128 = vstv %s118
      %v129 = vadd.s32 %v128, %v127
      %v130 = vlaneseq
      %v131 = vand.u32 %v130, 127
      %v132 = vstv %s114
      %v133 = vadd.s32 %v132, %v131
      %vm134 = vcmp.eq.s32.totalorder %v133, %v129
      %v135 = vsel %vm134, -inf, %v111
      %v136 = vld [vmem:[#allocation2] sm:$0xff]
      %vm137 = vcmask 64512
      %v138 = vsel %vm137, %v135, -inf
      %139 = vmax.xlane.f32.xlu0 %v138
      %v140 = vpop.xlane.xlu0 %139
      %v141 = vmax.f32 %v136, %v140
      %v142 = vsub.f32 %v136, %v141
      %v143 = vmul.f32 %v142, 1.442695
      %v144 = vpow.pop %v143
      %v145 = vld [vmem:[#allocation3] sm:$0xff]
      %v146 = vmul.f32 %v144, %v145
      %148 = vset.pattern.permute.xlu0 0
      %149 = vperm.xlu0 %148, %v141
      %v150 = vpop.permute.xlu0 %149
      %v152 = vsub.f32 %v135, %v150
      %v153 = vmul.f32 %v152, 1.442695
      %v154 = vpow.pop %v153
      %v155 = vsel %vm137, %v154, 0.0
      %156 = vadd.xlane.f32.xlu0 %v155
      %v157 = vpop.xlane.xlu0 %156
      %v158 = vadd.f32 %v146, %v157
      %vm159 = vcmask 7168
      %160 = vst.msk [vmem:[#allocation3] sm:$0xff] %vm159, %v158
      %161 = vst.msk [vmem:[#allocation2] sm:$0xff] %vm159, %v141
    $region25: #{tpu_custom_call.1} parent=1 // pred_fallthru
      _
    %p162 = pneg %p123
    // Predicated region
    $region26: #{tpu_custom_call.1} parent=1 // pred_check
      _
    $region27: #{tpu_custom_call.1} parent=1 // pred_check_branch
      %164 = sbr.rel (%p123) target = $region29
    $region28: #{tpu_custom_call.1} parent=1 // pred_region
      %v165 = vld [vmem:[#allocation2] sm:$0xff]
      %vm166 = vcmask 64512
      %v167 = vsel %vm166, %v111, -inf
      %168 = vmax.xlane.f32.xlu0 %v167
      %v169 = vpop.xlane.xlu0 %168
      %v170 = vmax.f32 %v165, %v169
      %v171 = vsub.f32 %v165, %v170
      %v172 = vmul.f32 %v171, 1.442695
      %v173 = vpow.pop %v172
      %v174 = vld [vmem:[#allocation3] sm:$0xff]
      %v175 = vmul.f32 %v173, %v174
      %177 = vset.pattern.permute.xlu0 0
      %178 = vperm.xlu0 %177, %v170
      %v179 = vpop.permute.xlu0 %178
      %v181 = vsub.f32 %v111, %v179
      %v182 = vmul.f32 %v181, 1.442695
      %v183 = vpow.pop %v182
      %v184 = vsel %vm166, %v183, 0.0
      %185 = vadd.xlane.f32.xlu0 %v184
      %v186 = vpop.xlane.xlu0 %185
      %v187 = vadd.f32 %v175, %v186
      %vm188 = vcmask 7168
      %189 = vst.msk [vmem:[#allocation3] sm:$0xff] %vm188, %v187
      %190 = vst.msk [vmem:[#allocation2] sm:$0xff] %vm188, %v170
    $region29: #{tpu_custom_call.1} parent=1 // pred_fallthru
      _
    // Predicated region
    $region30: #{tpu_custom_call.1} parent=1 // pred_check
      %p191 = pneg %p35
    $region31: #{tpu_custom_call.1} parent=1 // pred_check_branch
      %193 = sbr.rel (%p191) target = $region33
    $region32: #{tpu_custom_call.1} parent=1 // pred_region
      %v194 = vld [vmem:[#allocation2] sm:$0xff]
      %v195 = vld [vmem:[#allocation3] sm:$0xff]
      %v196 = vlog2.pop %v195
      %v197 = vmul.f32 %v196, 0.6931472
      %v198 = vadd.f32 %v194, %v197
      %vm199 = vcmask 7168
      %200 = vst.msk [vmem:[%s2] sm:$0xff] %vm199, %v198
    $region33: #{tpu_custom_call.1} parent=1 // pred_fallthru
      _
    // Predicated region
    $region34: #{tpu_custom_call.1} parent=1 // pred_check
      _
    $region35: #{tpu_custom_call.1} parent=1 // pred_check_branch
      %202 = sbr.rel (0) target = $region37
    $region36: #{tpu_custom_call.1} parent=1 // pred_region
      _
    $region37: #{tpu_custom_call.1} parent=1 // pred_fallthru
      _
    // Predicated region
    $region38: #{tpu_custom_call.1} parent=1 // pred_check
      _
    $region39: #{tpu_custom_call.1} parent=1 // pred_check_branch
      %204 = sbr.rel (0) target = $region41
    $region40: #{tpu_custom_call.1} parent=1 // pred_region
      _
    $region41: #{tpu_custom_call.1} parent=1 // pred_fallthru
      _
    %205 = vsyncpa [#allocation5], 1
    %206 = vsyncpa [#allocation7], 1

</llo_original>
